<compile_context>
chip_gen: v7x
topology: tpu7x:2x2x1
jax: 0.10.0
libtpu: 0.0.40
codegen_flags: <defaults>
</compile_context>

<pallas_src>
import jax
import jax.numpy as jnp
import numpy as np
from jax.experimental import pallas as pl
from jax.experimental.pallas import tpu as pltpu


def _round_up(x, m):
    return ((x + m - 1) // m) * m


def _pad2d(a, rows, cols):
    return jnp.pad(a, ((0, rows - a.shape[0]), (0, cols - a.shape[1])))


def _group_boundaries(crops):
    # torch.cumsum(torch.unique_consecutive([inp.shape[-1]], return_counts=True)[1], 0)
    # shapes are static, so the consecutive grouping happens in Python.
    last_dims = [int(inp.shape[-1]) for inp in crops]
    idx_crops, count = [], 0
    for i, d in enumerate(last_dims):
        count += 1
        if i + 1 == len(last_dims) or last_dims[i + 1] != d:
            idx_crops.append((idx_crops[-1] if idx_crops else 0) + count)
            count = 0
    return idx_crops


# ------------------------------ fused kernel ---------------------------------


def _make_head_kernel(emit_backbone):
    def kernel(pooled_ref, wbb_ref, bbb_ref, w1_ref, b1_ref, w2_ref, b2_ref,
               wlast_ref, *out_refs):
        if emit_backbone:
            bb_ref, mlp_ref, last_ref = out_refs
        else:
            mlp_ref, last_ref = out_refs

        # Backbone linear projection on the XLA-pooled channel means.
        # bf16 x bf16 -> f32 accumulate on the MXU; bias add in f32.
        feat = jnp.dot(pooled_ref[...], wbb_ref[...],
                       preferred_element_type=jnp.float32) + bbb_ref[...]
        if emit_backbone:
            bb_ref[...] = feat

        # Head MLP: Linear -> GELU -> Linear.  Only the dot inputs are bf16;
        # GELU / bias adds stay in f32 (v5e VPU/EUP have no bf16).
        # TODO(synk): jax.nn.gelu defaults to the tanh approximation; PyTorch
        # nn.GELU defaults to exact erf (erf has no guaranteed Mosaic lowering).
        h = jnp.dot(feat.astype(jnp.bfloat16), w1_ref[...],
                    preferred_element_type=jnp.float32) + b1_ref[...]
        h = jax.nn.gelu(h)
        x_mlp = jnp.dot(h.astype(jnp.bfloat16), w2_ref[...],
                        preferred_element_type=jnp.float32) + b2_ref[...]
        mlp_ref[...] = x_mlp

        # F.normalize(x, dim=-1, p=2): x / max(||x||, 1e-12)
        #   == x * rsqrt(max(||x||^2, 1e-24))   (rsqrt runs on the EUP slot)
        sumsq = jnp.sum(x_mlp * x_mlp, axis=-1, keepdims=True)
        normed = x_mlp * jax.lax.rsqrt(jnp.maximum(sumsq, 1e-24))

        # Fused dino + proto last layers: one lane-dense matmul, split in wrapper.
        last_ref[...] = jnp.dot(normed.astype(jnp.bfloat16), wlast_ref[...],
                                preferred_element_type=jnp.float32)
    return kernel


# -------------------------- parameter preparation -----------------------------


def prepare_params(params):
    """One-time weight padding / bf16 casting (hoisted off the per-step path)."""
    c_in, embed = params["w_bb"].shape
    hidden = params["w1"].shape[1]
    bottleneck = params["w2"].shape[1]
    out_dino = params["w_dino"].shape[1]
    n_proto = params["w_proto"].shape[1]

    c_pad = _round_up(c_in, 128)          # lane dim of the pooled kernel input
    e_pad = _round_up(embed, 128)
    h_pad = _round_up(hidden, 128)
    b_pad = _round_up(bottleneck, 128)
    l_pad = _round_up(out_dino + n_proto, 128)

    w_last = jnp.concatenate(
        [params["w_dino"], params["w_proto"]], axis=1).astype(jnp.float32)

    return dict(
        dims=dict(c_in=c_in, embed=embed, hidden=hidden, bottleneck=bottleneck,
                  out_dino=out_dino, n_proto=n_proto, c_pad=c_pad, e_pad=e_pad,
                  h_pad=h_pad, b_pad=b_pad, l_pad=l_pad),
        # bf16 MXU operands, zero-padded so padded lanes/rows contribute nothing.
        w_bb=_pad2d(params["w_bb"].astype(jnp.float32), c_pad, e_pad).astype(jnp.bfloat16),
        w1=_pad2d(params["w1"].astype(jnp.float32), e_pad, h_pad).astype(jnp.bfloat16),
        w2=_pad2d(params["w2"].astype(jnp.float32), h_pad, b_pad).astype(jnp.bfloat16),
        w_last=_pad2d(w_last, b_pad, l_pad).astype(jnp.bfloat16),
        # biases stay f32 (added after f32-accumulated matmuls).
        b_bb=_pad2d(params["b_bb"].astype(jnp.float32), 1, e_pad),
        b1=_pad2d(params["b1"].astype(jnp.float32), 1, h_pad),
        b2=_pad2d(params["b2"].astype(jnp.float32), 1, b_pad),
    )


# ------------------------ MultiCropWrapperDecouple ---------------------------


def multi_crop_wrapper_decouple_forward(x, prepared, which_feat_to_cluster="backbone"):
    """Mirror of MultiCropWrapperDecouple.forward.

    x: single NCHW array or list of NCHW arrays (possibly different resolutions).
    prepared: output of prepare_params().
    Returns (x_dino, x_proto, x_cluster, x_mlp).
    """
    assert which_feat_to_cluster in ("backbone", "mlp")
    if not isinstance(x, (list, tuple)):
        x = [x]
    d = prepared["dims"]

    idx_crops = _group_boundaries(x)

    # Global average pool per resolution group in XLA (f32 accumulation).  The
    # GAP is the only resolution-dependent piece of the synthetic backbone, so
    # only the pooled (N, C) tensor has to enter the kernel -- no padded pixel
    # slab, no HW-expanded weight.
    pooled_groups, start = [], 0
    for end in idx_crops:
        g = jnp.concatenate(x[start:end], axis=0).astype(jnp.float32)  # (Ng,C,H,W)
        pooled_groups.append(jnp.mean(g, axis=(2, 3)))                 # (Ng, C)
        start = end
    pooled = jnp.concatenate(pooled_groups, axis=0)
    n_total = int(pooled.shape[0])

    # Row tile: sublane-aligned, and >= 2 grid steps whenever the batch allows
    # so dimension_semantics=("parallel",) can shard across v7x's 2 TensorCores.
    tm = min(128, _round_up(max(1, -(-n_total // 2)), 8))
    n_rows = _round_up(n_total, tm)
    grid = (n_rows // tm,)

    pooled = _pad2d(pooled, n_rows, d["c_pad"]).astype(jnp.bfloat16)

    emit_backbone = which_feat_to_cluster == "backbone"
    kernel = _make_head_kernel(emit_backbone)

    row_spec = lambda cols: pl.BlockSpec((tm, cols), lambda i: (i, 0))
    fixed_spec = lambda r, c: pl.BlockSpec((r, c), lambda i: (0, 0))

    out_shape, out_specs = [], []
    if emit_backbone:
        out_shape.append(jax.ShapeDtypeStruct((n_rows, d["e_pad"]), jnp.float32))
        out_specs.append(row_spec(d["e_pad"]))
    out_shape += [jax.ShapeDtypeStruct((n_rows, d["b_pad"]), jnp.float32),
                  jax.ShapeDtypeStruct((n_rows, d["l_pad"]), jnp.float32)]
    out_specs += [row_spec(d["b_pad"]), row_spec(d["l_pad"])]

    # Sizes for cost estimate + VMEM budget (bf16 weights/activations, f32 out).
    w_elems = (d["c_pad"] * d["e_pad"] + d["e_pad"] * d["h_pad"] +
               d["h_pad"] * d["b_pad"] + d["b_pad"] * d["l_pad"])
    bias_bytes = 4 * (d["e_pad"] + d["h_pad"] + d["b_pad"])
    out_cols = d["b_pad"] + d["l_pad"] + (d["e_pad"] if emit_backbone else 0)
    resident = 2 * (2 * w_elems + bias_bytes + 2 * tm * d["c_pad"] + 4 * tm * out_cols)
    vmem_limit = int(min(64 << 20, max(32 << 20, 2 * resident)))

    flops = 2 * n_rows * w_elems
    bytes_accessed = (2 * n_rows * d["c_pad"] + 2 * w_elems + bias_bytes +
                      4 * n_rows * out_cols)
    transcendentals = n_rows * (d["h_pad"] + 1)

    outs = pl.pallas_call(
        kernel,
        out_shape=tuple(out_shape),
        grid=grid,
        in_specs=[
            row_spec(d["c_pad"]),                       # pooled channel means
            fixed_spec(d["c_pad"], d["e_pad"]),         # backbone weight
            fixed_spec(1, d["e_pad"]),                  # backbone bias
            fixed_spec(d["e_pad"], d["h_pad"]),         # head w1
            fixed_spec(1, d["h_pad"]),                  # head b1
            fixed_spec(d["h_pad"], d["b_pad"]),         # head w2
            fixed_spec(1, d["b_pad"]),                  # head b2
            fixed_spec(d["b_pad"], d["l_pad"]),         # fused [w_dino | w_proto]
        ],
        out_specs=tuple(out_specs),
        compiler_params=pltpu.CompilerParams(
            dimension_semantics=("parallel",),
            vmem_limit_bytes=vmem_limit),
        cost_estimate=pl.CostEstimate(
            flops=int(flops),
            transcendentals=int(transcendentals),
            bytes_accessed=int(bytes_accessed)),
    )(pooled, prepared["w_bb"], prepared["b_bb"], prepared["w1"], prepared["b1"],
      prepared["w2"], prepared["b2"], prepared["w_last"])

    if emit_backbone:
        x_bb_p, x_mlp_p, x_last_p = outs
    else:
        x_mlp_p, x_last_p = outs
        x_bb_p = None

    x_mlp = x_mlp_p[:n_total, :d["bottleneck"]]
    x_dino = x_last_p[:n_total, :d["out_dino"]]
    x_proto = x_last_p[:n_total, d["out_dino"]:d["out_dino"] + d["n_proto"]]
    x_cluster = x_bb_p[:n_total, :d["embed"]] if emit_backbone else x_mlp
    return x_dino, x_proto, x_cluster, x_mlp


# ------------------------------ reference ------------------------------------


def _reference_forward(crops, params, which_feat_to_cluster="backbone"):
    """Pure-JAX mirror of the module (same synthetic backbone/head)."""
    idx_crops = _group_boundaries(crops)
    feats, start = [], 0
    for end in idx_crops:
        g = jnp.concatenate(crops[start:end], axis=0)
        n, c, h, w = g.shape
        pooled = g.reshape(n, c, h * w).mean(axis=-1)
        feats.append(pooled @ params["w_bb"] + params["b_bb"])
        start = end
    f = jnp.concatenate(feats, axis=0)
    hid = jax.nn.gelu(f @ params["w1"] + params["b1"])
    x_mlp = hid @ params["w2"] + params["b2"]
    norm = jnp.sqrt(jnp.sum(x_mlp * x_mlp, axis=-1, keepdims=True))
    normed = x_mlp / jnp.maximum(norm, 1e-12)
    x_dino = normed @ params["w_dino"]
    x_proto = normed @ params["w_proto"]
    x_cluster = f if which_feat_to_cluster == "backbone" else x_mlp
    return x_dino, x_proto, x_cluster, x_mlp


# --------------------------------- main ---------------------------------------

if __name__ == "__main__":
    C = 4          # input channels
    EMBED = 32     # backbone feature dim
    HIDDEN = 64    # head MLP hidden
    BOTTLENECK = 32
    OUT_DINO = 64
    N_PROTO = 32

    key = jax.random.PRNGKey(0)
    ks = jax.random.split(key, 11)

    params = {
        "w_bb":    0.1 * jax.random.normal(ks[0], (C, EMBED), jnp.float32),
        "b_bb":    0.1 * jax.random.normal(ks[1], (1, EMBED), jnp.float32),
        "w1":      0.1 * jax.random.normal(ks[2], (EMBED, HIDDEN), jnp.float32),
        "b1":      0.1 * jax.random.normal(ks[3], (1, HIDDEN), jnp.float32),
        "w2":      0.1 * jax.random.normal(ks[4], (HIDDEN, BOTTLENECK), jnp.float32),
        "b2":      0.1 * jax.random.normal(ks[5], (1, BOTTLENECK), jnp.float32),
        "w_dino":  0.1 * jax.random.normal(ks[6], (BOTTLENECK, OUT_DINO), jnp.float32),
        "w_proto": 0.1 * jax.random.normal(ks[7], (BOTTLENECK, N_PROTO), jnp.float32),
    }
    prepared = prepare_params(params)   # one-time, off the hot path

    # Multi-crop inputs: two "global" 16x16 crops + one "local" 8x8 crop (NCHW).
    crops = [
        jax.random.normal(ks[8], (2, C, 16, 16), jnp.float32),
        jax.random.normal(ks[9], (2, C, 16, 16), jnp.float32),
        jax.random.normal(ks[10], (2, C, 8, 8), jnp.float32),
    ]

    # bf16 MXU operands -> compare against the f32 reference at a loose tolerance.
    TOL = dict(atol=2e-2, rtol=2e-2)

    for which in ("backbone", "mlp"):
        outs = multi_crop_wrapper_decouple_forward(
            crops, prepared, which_feat_to_cluster=which)
        jax.block_until_ready(outs)
        x_dino, x_proto, x_cluster, x_mlp = outs

        assert x_dino.shape == (6, OUT_DINO)
        assert x_proto.shape == (6, N_PROTO)
        assert x_cluster.shape == (6, EMBED if which == "backbone" else BOTTLENECK)
        assert x_mlp.shape == (6, BOTTLENECK)

        ref = _reference_forward(crops, params, which_feat_to_cluster=which)
        for got, want in zip(outs, ref):
            np.testing.assert_allclose(np.asarray(got), np.asarray(want), **TOL)

    print("KERNEL_OK")
</pallas_src>

<mosaic_0001>
module attributes {stable_mosaic.version = 11 : i64} {
  func.func @kernel(%arg0: i32, %arg1: memref<8x128xbf16, #tpu.memory_space<vmem>>, %arg2: memref<128x128xbf16, #tpu.memory_space<vmem>>, %arg3: memref<1x128xf32, #tpu.memory_space<vmem>>, %arg4: memref<128x128xbf16, #tpu.memory_space<vmem>>, %arg5: memref<1x128xf32, #tpu.memory_space<vmem>>, %arg6: memref<128x128xbf16, #tpu.memory_space<vmem>>, %arg7: memref<1x128xf32, #tpu.memory_space<vmem>>, %arg8: memref<128x128xbf16, #tpu.memory_space<vmem>>, %arg9: memref<8x128xf32, #tpu.memory_space<vmem>>, %arg10: memref<8x128xf32, #tpu.memory_space<vmem>>, %arg11: memref<8x128xf32, #tpu.memory_space<vmem>>) attributes {dimension_semantics = [#tpu.dimension_semantics<parallel>], iteration_bounds = array<i64: 1>, scalar_prefetch = 0 : i64, scratch_operands = 0 : i64, tpu.core_type = #tpu.core_type<tc>, window_params = [{transform_indices = @transform_0, window_bounds = array<i64: 8, 128>}, {pipeline_mode = #tpu.pipeline_mode<synchronous>, transform_indices = @transform_1, window_bounds = array<i64: 128, 128>}, {pipeline_mode = #tpu.pipeline_mode<synchronous>, transform_indices = @transform_2, window_bounds = array<i64: 1, 128>}, {pipeline_mode = #tpu.pipeline_mode<synchronous>, transform_indices = @transform_3, window_bounds = array<i64: 128, 128>}, {pipeline_mode = #tpu.pipeline_mode<synchronous>, transform_indices = @transform_4, window_bounds = array<i64: 1, 128>}, {pipeline_mode = #tpu.pipeline_mode<synchronous>, transform_indices = @transform_5, window_bounds = array<i64: 128, 128>}, {pipeline_mode = #tpu.pipeline_mode<synchronous>, transform_indices = @transform_6, window_bounds = array<i64: 1, 128>}, {pipeline_mode = #tpu.pipeline_mode<synchronous>, transform_indices = @transform_7, window_bounds = array<i64: 128, 128>}, {transform_indices = @transform_8, window_bounds = array<i64: 8, 128>}, {transform_indices = @transform_9, window_bounds = array<i64: 8, 128>}, {transform_indices = @transform_10, window_bounds = array<i64: 8, 128>}]} {
    %c0 = arith.constant 0 : index
    %c0_0 = arith.constant 0 : index
    %0 = vector.load %arg1[%c0, %c0_0] : memref<8x128xbf16, #tpu.memory_space<vmem>>, vector<8x128xbf16>
    %c0_1 = arith.constant 0 : index
    %c0_2 = arith.constant 0 : index
    %1 = vector.load %arg2[%c0_1, %c0_2] : memref<128x128xbf16, #tpu.memory_space<vmem>>, vector<128x128xbf16>
    %cst = arith.constant dense<0.000000e+00> : vector<8x128xf32>
    %2 = tpu.matmul %0, %1, %cst {dimension_numbers = #tpu.dot_dimension_numbers<[1], [0], [0], [1], [0, 0, 1, 1], [], []>} : vector<8x128xbf16>, vector<128x128xbf16>, vector<8x128xf32> -> vector<8x128xf32>
    %c0_3 = arith.constant 0 : index
    %c0_4 = arith.constant 0 : index
    %3 = vector.load %arg3[%c0_3, %c0_4] : memref<1x128xf32, #tpu.memory_space<vmem>>, vector<1x128xf32>
    %4 = vector.broadcast %3 : vector<1x128xf32> to vector<8x128xf32>
    %5 = arith.addf %2, %4 : vector<8x128xf32>
    %c0_5 = arith.constant 0 : index
    %c0_6 = arith.constant 0 : index
    %6 = vector.load %arg9[%c0_5, %c0_6] : memref<8x128xf32, #tpu.memory_space<vmem>>, vector<8x128xf32>
    tpu.vector_store %arg9[%c0_5, %c0_6], %5 {strides = array<i32>} : memref<8x128xf32, #tpu.memory_space<vmem>>, vector<8x128xf32>,
    %7 = arith.truncf %5 : vector<8x128xf32> to vector<8x128xbf16>
    %c0_7 = arith.constant 0 : index
    %c0_8 = arith.constant 0 : index
    %8 = vector.load %arg4[%c0_7, %c0_8] : memref<128x128xbf16, #tpu.memory_space<vmem>>, vector<128x128xbf16>
    %cst_9 = arith.constant dense<0.000000e+00> : vector<8x128xf32>
    %9 = tpu.matmul %7, %8, %cst_9 {dimension_numbers = #tpu.dot_dimension_numbers<[1], [0], [0], [1], [0, 0, 1, 1], [], []>} : vector<8x128xbf16>, vector<128x128xbf16>, vector<8x128xf32> -> vector<8x128xf32>
    %c0_10 = arith.constant 0 : index
    %c0_11 = arith.constant 0 : index
    %10 = vector.load %arg5[%c0_10, %c0_11] : memref<1x128xf32, #tpu.memory_space<vmem>>, vector<1x128xf32>
    %11 = vector.broadcast %10 : vector<1x128xf32> to vector<8x128xf32>
    %12 = arith.addf %9, %11 : vector<8x128xf32>
    %13 = arith.mulf %12, %12 : vector<8x128xf32>
    %14 = arith.mulf %12, %13 : vector<8x128xf32>
    %cst_12 = arith.constant 4.471500e-02 : f32
    %15 = vector.broadcast %cst_12 : f32 to vector<8x128xf32>
    %16 = arith.mulf %15, %14 : vector<8x128xf32>
    %17 = arith.addf %12, %16 : vector<8x128xf32>
    %cst_13 = arith.constant 0.797884583 : f32
    %18 = vector.broadcast %cst_13 : f32 to vector<8x128xf32>
    %19 = arith.mulf %18, %17 : vector<8x128xf32>
    %20 = math.tanh %19 : vector<8x128xf32>
    %cst_14 = arith.constant 1.000000e+00 : f32
    %21 = vector.broadcast %cst_14 : f32 to vector<8x128xf32>
    %22 = arith.addf %21, %20 : vector<8x128xf32>
    %cst_15 = arith.constant 5.000000e-01 : f32
    %23 = vector.broadcast %cst_15 : f32 to vector<8x128xf32>
    %24 = arith.mulf %23, %22 : vector<8x128xf32>
    %25 = arith.mulf %12, %24 : vector<8x128xf32>
    %26 = arith.truncf %25 : vector<8x128xf32> to vector<8x128xbf16>
    %c0_16 = arith.constant 0 : index
    %c0_17 = arith.constant 0 : index
    %27 = vector.load %arg6[%c0_16, %c0_17] : memref<128x128xbf16, #tpu.memory_space<vmem>>, vector<128x128xbf16>
    %cst_18 = arith.constant dense<0.000000e+00> : vector<8x128xf32>
    %28 = tpu.matmul %26, %27, %cst_18 {dimension_numbers = #tpu.dot_dimension_numbers<[1], [0], [0], [1], [0, 0, 1, 1], [], []>} : vector<8x128xbf16>, vector<128x128xbf16>, vector<8x128xf32> -> vector<8x128xf32>
    %c0_19 = arith.constant 0 : index
    %c0_20 = arith.constant 0 : index
    %29 = vector.load %arg7[%c0_19, %c0_20] : memref<1x128xf32, #tpu.memory_space<vmem>>, vector<1x128xf32>
    %30 = vector.broadcast %29 : vector<1x128xf32> to vector<8x128xf32>
    %31 = arith.addf %28, %30 : vector<8x128xf32>
    %c0_21 = arith.constant 0 : index
    %c0_22 = arith.constant 0 : index
    %32 = vector.load %arg10[%c0_21, %c0_22] : memref<8x128xf32, #tpu.memory_space<vmem>>, vector<8x128xf32>
    tpu.vector_store %arg10[%c0_21, %c0_22], %31 {strides = array<i32>} : memref<8x128xf32, #tpu.memory_space<vmem>>, vector<8x128xf32>,
    %33 = arith.mulf %31, %31 : vector<8x128xf32>
    %cst_23 = arith.constant dense<0.000000e+00> : vector<8xf32>
    %34 = vector.multi_reduction <add>, %33, %cst_23 [1] : vector<8x128xf32> to vector<8xf32>
    %35 = vector.shape_cast %34 : vector<8xf32> to vector<8x1xf32>
    %cst_24 = arith.constant 1.000000e-24 : f32
    %36 = vector.broadcast %cst_24 : f32 to vector<8x1xf32>
    %37 = arith.maximumf %35, %36 : vector<8x1xf32>
    %38 = math.rsqrt %37 : vector<8x1xf32>
    %39 = vector.broadcast %38 : vector<8x1xf32> to vector<8x128xf32>
    %40 = arith.mulf %31, %39 : vector<8x128xf32>
    %41 = arith.truncf %40 : vector<8x128xf32> to vector<8x128xbf16>
    %c0_25 = arith.constant 0 : index
    %c0_26 = arith.constant 0 : index
    %42 = vector.load %arg8[%c0_25, %c0_26] : memref<128x128xbf16, #tpu.memory_space<vmem>>, vector<128x128xbf16>
    %cst_27 = arith.constant dense<0.000000e+00> : vector<8x128xf32>
    %43 = tpu.matmul %41, %42, %cst_27 {dimension_numbers = #tpu.dot_dimension_numbers<[1], [0], [0], [1], [0, 0, 1, 1], [], []>} : vector<8x128xbf16>, vector<128x128xbf16>, vector<8x128xf32> -> vector<8x128xf32>
    %c0_28 = arith.constant 0 : index
    %c0_29 = arith.constant 0 : index
    %44 = vector.load %arg11[%c0_28, %c0_29] : memref<8x128xf32, #tpu.memory_space<vmem>>, vector<8x128xf32>
    tpu.vector_store %arg11[%c0_28, %c0_29], %43 {strides = array<i32>} : memref<8x128xf32, #tpu.memory_space<vmem>>, vector<8x128xf32>,
    return
  }
  func.func @transform_0(%arg0: i32) -> (i32, i32) {
    %c0_i32 = arith.constant 0 : i32
    %c0_i32_0 = arith.constant 0 : i32
    return %arg0, %c0_i32 : i32, i32
  }
  func.func @transform_1(%arg0: i32) -> (i32, i32) {
    %c0_i32 = arith.constant 0 : i32
    %c0_i32_0 = arith.constant 0 : i32
    %c0_i32_1 = arith.constant 0 : i32
    return %c0_i32, %c0_i32_0 : i32, i32
  }
  func.func @transform_2(%arg0: i32) -> (i32, i32) {
    %c0_i32 = arith.constant 0 : i32
    %c0_i32_0 = arith.constant 0 : i32
    %c0_i32_1 = arith.constant 0 : i32
    return %c0_i32, %c0_i32_0 : i32, i32
  }
  func.func @transform_3(%arg0: i32) -> (i32, i32) {
    %c0_i32 = arith.constant 0 : i32
    %c0_i32_0 = arith.constant 0 : i32
    %c0_i32_1 = arith.constant 0 : i32
    return %c0_i32, %c0_i32_0 : i32, i32
  }
  func.func @transform_4(%arg0: i32) -> (i32, i32) {
    %c0_i32 = arith.constant 0 : i32
    %c0_i32_0 = arith.constant 0 : i32
    %c0_i32_1 = arith.constant 0 : i32
    return %c0_i32, %c0_i32_0 : i32, i32
  }
  func.func @transform_5(%arg0: i32) -> (i32, i32) {
    %c0_i32 = arith.constant 0 : i32
    %c0_i32_0 = arith.constant 0 : i32
    %c0_i32_1 = arith.constant 0 : i32
    return %c0_i32, %c0_i32_0 : i32, i32
  }
  func.func @transform_6(%arg0: i32) -> (i32, i32) {
    %c0_i32 = arith.constant 0 : i32
    %c0_i32_0 = arith.constant 0 : i32
    %c0_i32_1 = arith.constant 0 : i32
    return %c0_i32, %c0_i32_0 : i32, i32
  }
  func.func @transform_7(%arg0: i32) -> (i32, i32) {
    %c0_i32 = arith.constant 0 : i32
    %c0_i32_0 = arith.constant 0 : i32
    %c0_i32_1 = arith.constant 0 : i32
    return %c0_i32, %c0_i32_0 : i32, i32
  }
  func.func @transform_8(%arg0: i32) -> (i32, i32) {
    %c0_i32 = arith.constant 0 : i32
    %c0_i32_0 = arith.constant 0 : i32
    return %arg0, %c0_i32 : i32, i32
  }
  func.func @transform_9(%arg0: i32) -> (i32, i32) {
    %c0_i32 = arith.constant 0 : i32
    %c0_i32_0 = arith.constant 0 : i32
    return %arg0, %c0_i32 : i32, i32
  }
  func.func @transform_10(%arg0: i32) -> (i32, i32) {
    %c0_i32 = arith.constant 0 : i32
    %c0_i32_0 = arith.constant 0 : i32
    return %arg0, %c0_i32 : i32, i32
  }
}

</mosaic_0001>

<llo_original>
// kernel: tpu_custom_call.1
$region0: #{tpu_custom_call.1}
  #allocation0 [shape = 'u32[]', space=smem, size = 0x4, offset = 0x4, fixed_abs, tag = 'smem constant byte address 0x4 - core index']
  #allocation1 [shape = 'u32[144,128]{1,0:T(1,128)}', space=vmem, size = 0x12000, scoped, tag = 'internal scratch']
  %s0 = inlined_call_operand.hbm [shape: bf16[8,128], index: 0, kind: input, shape index: {}]
  %s1 = inlined_call_operand.hbm [shape: bf16[128,128], index: 1, kind: input, shape index: {}]
  %s2 = inlined_call_operand.vmem [shape: f32[1,128], index: 2, kind: input, shape index: {}]
  %s3 = inlined_call_operand.hbm [shape: bf16[128,128], index: 3, kind: input, shape index: {}]
  %s4 = inlined_call_operand.vmem [shape: f32[1,128], index: 4, kind: input, shape index: {}]
  %s5 = inlined_call_operand.hbm [shape: bf16[128,128], index: 5, kind: input, shape index: {}]
  %s6 = inlined_call_operand.vmem [shape: f32[1,128], index: 6, kind: input, shape index: {}]
  %s7 = inlined_call_operand.hbm [shape: bf16[128,128], index: 7, kind: input, shape index: {}]
  %s8 = inlined_call_operand.hbm [shape: f32[8,128], index: 8, kind: output, shape index: {0}]
  %s9 = inlined_call_operand.hbm [shape: f32[8,128], index: 9, kind: output, shape index: {1}]
  %s10 = inlined_call_operand.hbm [shape: f32[8,128], index: 10, kind: output, shape index: {2}]
  %11 = xla_tuple %s8, %s9, %s10
  %s12 = sld [smem:[#allocation0]]
  $region78: #{tpu_custom_call.1} parent=0
    _
  %s14 = ssub.s32 1, %s12
  %s15 = scalar_select 0, %s14, %s12
  $region1: #{tpu_custom_call.1} parent=0
    #allocation2 [shape = 'u8[2048]{0}', space=vmem, size = 0x800, scoped, tag = 'input window, operand 0, single buffered']
    #allocation3 [shape = 's32[1]{0}', space=sflag, size = 0x4, scoped, tag = 'scoped memory for tpu_custom_call.1']
    #allocation4 [shape = 's32[1]{0}', space=sflag, size = 0x4, scoped, tag = 'scoped memory for tpu_custom_call.1']
    #allocation5 [shape = 'u8[32768]{0}', space=vmem, size = 0x8000, scoped, tag = 'input window, operand 1, single buffered']
    #allocation6 [shape = 's32[1]{0}', space=sflag, size = 0x4, scoped, tag = 'scoped memory for tpu_custom_call.1']
    #allocation7 [shape = 'u8[32768]{0}', space=vmem, size = 0x8000, scoped, tag = 'input window, operand 3, single buffered']
    #allocation8 [shape = 'u8[32768]{0}', space=vmem, size = 0x8000, scoped, tag = 'input window, operand 5, single buffered']
    #allocation9 [shape = 's32[1]{0}', space=sflag, size = 0x4, scoped, tag = 'scoped memory for tpu_custom_call.1']
    #allocation10 [shape = 'u8[32768]{0}', space=vmem, size = 0x8000, scoped, tag = 'input window, operand 7, single buffered']
    #allocation11 [shape = 'u8[4096]{0}', space=vmem, size = 0x1000, scoped, tag = 'output window, operand 0, single buffered']
    #allocation12 [shape = 'u8[4096]{0}', space=vmem, size = 0x1000, scoped, tag = 'output window, operand 1, single buffered']
    #allocation13 [shape = 's32[1]{0}', space=sflag, size = 0x4, scoped, tag = 'scoped memory for tpu_custom_call.1']
    #allocation14 [shape = 'u8[4096]{0}', space=vmem, size = 0x1000, scoped, tag = 'output window, operand 2, single buffered']
    %16 = vsyncpa [#allocation3], 0
    %17 = vsyncpa [#allocation6], 0
    %18 = vsyncpa [#allocation9], 0
    %19 = vsyncpa [#allocation4], 0
    %20 = vsyncpa [#allocation13], 0
    // Predicated region
    $region2: #{tpu_custom_call.1} parent=1 // pred_check
      _
    $region3: #{tpu_custom_call.1} parent=1 // pred_check_branch
      %22 = sbr.rel (0) target = $region5
    $region4: #{tpu_custom_call.1} parent=1 // pred_region
      %s24 = ssub.s32 64, 64
      %25 = vsyncadd [#allocation3], %s24
      %s27 = sshll.u32 [#allocation2], 4
      %s28 = int_to_ptr.vmem [resolvable:$true] %s27
      %30 = dma.hbm_to_vmem [thread:$0]  %s0, 64, %s28, [#allocation3]
    $region5: #{tpu_custom_call.1} parent=1 // pred_fallthru
      _
    // Predicated region
    $region6: #{tpu_custom_call.1} parent=1 // pred_check
      _
    $region7: #{tpu_custom_call.1} parent=1 // pred_check_branch
      %32 = sbr.rel (0) target = $region9
    $region8: #{tpu_custom_call.1} parent=1 // pred_region
      %s34 = ssub.s32 1024, 1024
      %35 = vsyncadd [#allocation6], %s34
      %s36 = sshll.u32 [#allocation5], 4
      %s37 = int_to_ptr.vmem [resolvable:$true] %s36
      %42 = dma.hbm_to_vmem [thread:$0]  %s1, 1024, %s37, [#allocation6], 64, 64, 4
    $region9: #{tpu_custom_call.1} parent=1 // pred_fallthru
      _
    // Predicated region
    $region10: #{tpu_custom_call.1} parent=1 // pred_check
      _
    $region11: #{tpu_custom_call.1} parent=1 // pred_check_branch
      %44 = sbr.rel (0) target = $region13
    $region12: #{tpu_custom_call.1} parent=1 // pred_region
      _
    $region13: #{tpu_custom_call.1} parent=1 // pred_fallthru
      _
    // Predicated region
    $region14: #{tpu_custom_call.1} parent=1 // pred_check
      _
    $region15: #{tpu_custom_call.1} parent=1 // pred_check_branch
      %46 = sbr.rel (0) target = $region17
    $region16: #{tpu_custom_call.1} parent=1 // pred_region
      %s48 = ssub.s32 1024, 1024
      %49 = vsyncadd [#allocation6], %s48
      %s50 = sshll.u32 [#allocation7], 4
      %s51 = int_to_ptr.vmem [resolvable:$true] %s50
      %56 = dma.hbm_to_vmem [thread:$0]  %s3, 1024, %s51, [#allocation6], 64, 64, 4
    $region17: #{tpu_custom_call.1} parent=1 // pred_fallthru
      _
    // Predicated region
    $region18: #{tpu_custom_call.1} parent=1 // pred_check
      _
    $region19: #{tpu_custom_call.1} parent=1 // pred_check_branch
      %58 = sbr.rel (0) target = $region21
    $region20: #{tpu_custom_call.1} parent=1 // pred_region
      _
    $region21: #{tpu_custom_call.1} parent=1 // pred_fallthru
      _
    // Predicated region
    $region22: #{tpu_custom_call.1} parent=1 // pred_check
      _
    $region23: #{tpu_custom_call.1} parent=1 // pred_check_branch
      %60 = sbr.rel (0) target = $region25
    $region24: #{tpu_custom_call.1} parent=1 // pred_region
      %s62 = ssub.s32 1024, 1024
      %63 = vsyncadd [#allocation9], %s62
      %s64 = sshll.u32 [#allocation8], 4
      %s65 = int_to_ptr.vmem [resolvable:$true] %s64
      %70 = dma.hbm_to_vmem [thread:$0]  %s5, 1024, %s65, [#allocation9], 64, 64, 4
    $region25: #{tpu_custom_call.1} parent=1 // pred_fallthru
      _
    // Predicated region
    $region26: #{tpu_custom_call.1} parent=1 // pred_check
      _
    $region27: #{tpu_custom_call.1} parent=1 // pred_check_branch
      %72 = sbr.rel (0) target = $region29
    $region28: #{tpu_custom_call.1} parent=1 // pred_region
      _
    $region29: #{tpu_custom_call.1} parent=1 // pred_fallthru
      _
    // Predicated region
    $region30: #{tpu_custom_call.1} parent=1 // pred_check
      _
    $region31: #{tpu_custom_call.1} parent=1 // pred_check_branch
      %74 = sbr.rel (0) target = $region33
    $region32: #{tpu_custom_call.1} parent=1 // pred_region
      %s76 = ssub.s32 1024, 1024
      %77 = vsyncadd [#allocation9], %s76
      %s78 = sshll.u32 [#allocation10], 4
      %s79 = int_to_ptr.vmem [resolvable:$true] %s78
      %84 = dma.hbm_to_vmem [thread:$0]  %s7, 1024, %s79, [#allocation9], 64, 64, 4
    $region33: #{tpu_custom_call.1} parent=1 // pred_fallthru
      _
    // Predicated region
    $region34: #{tpu_custom_call.1} parent=1 // pred_check
      _
    $region35: #{tpu_custom_call.1} parent=1 // pred_check_branch
      %86 = sbr.rel (0) target = $region37
    $region36: #{tpu_custom_call.1} parent=1 // pred_region
      %87 = dma.done [#allocation3], 64
    $region37: #{tpu_custom_call.1} parent=1 // pred_fallthru
      _
    // Predicated region
    $region38: #{tpu_custom_call.1} parent=1 // pred_check
      _
    $region39: #{tpu_custom_call.1} parent=1 // pred_check_branch
      %89 = sbr.rel (0) target = $region41
    $region40: #{tpu_custom_call.1} parent=1 // pred_region
      %90 = dma.done [#allocation6], 1024
    $region41: #{tpu_custom_call.1} parent=1 // pred_fallthru
      _
    // Predicated region
    $region42: #{tpu_custom_call.1} parent=1 // pred_check
      _
    $region43: #{tpu_custom_call.1} parent=1 // pred_check_branch
      %92 = sbr.rel (0) target = $region45
    $region44: #{tpu_custom_call.1} parent=1 // pred_region
      %93 = dma.done [#allocation6], 1024
    $region45: #{tpu_custom_call.1} parent=1 // pred_fallthru
      _
    // Predicated region
    $region46: #{tpu_custom_call.1} parent=1 // pred_check
      _
    $region47: #{tpu_custom_call.1} parent=1 // pred_check_branch
      %95 = sbr.rel (0) target = $region49
    $region48: #{tpu_custom_call.1} parent=1 // pred_region
      %96 = dma.done [#allocation9], 1024
    $region49: #{tpu_custom_call.1} parent=1 // pred_fallthru
      _
    // Predicated region
    $region50: #{tpu_custom_call.1} parent=1 // pred_check
      _
    $region51: #{tpu_custom_call.1} parent=1 // pred_check_branch
      %98 = sbr.rel (0) target = $region53
    $region52: #{tpu_custom_call.1} parent=1 // pred_region
      %99 = dma.done [#allocation9], 1024
    $region53: #{tpu_custom_call.1} parent=1 // pred_fallthru
      _
    %v101 = vld [vmem:[#allocation2] sm:$0xf]
    %v102 = vld [vmem:[#allocation5] sm:$0xf]
    %v103 = vld [vmem:[#allocation5 + $0x4] sm:$0xf]
    %v104 = vld [vmem:[#allocation5 + $0x8] sm:$0xf]
    %v105 = vld [vmem:[#allocation5 + $0xc] sm:$0xf]
    %v106 = vld [vmem:[#allocation5 + $0x10] sm:$0xf]
    %v107 = vld [vmem:[#allocation5 + $0x14] sm:$0xf]
    %v108 = vld [vmem:[#allocation5 + $0x18] sm:$0xf]
    %v109 = vld [vmem:[#allocation5 + $0x1c] sm:$0xf]
    %v110 = vld [vmem:[#allocation5 + $0x20] sm:$0xf]
    %v111 = vld [vmem:[#allocation5 + $0x24] sm:$0xf]
    %v112 = vld [vmem:[#allocation5 + $0x28] sm:$0xf]
    %v113 = vld [vmem:[#allocation5 + $0x2c] sm:$0xf]
    %v114 = vld [vmem:[#allocation5 + $0x30] sm:$0xf]
    %v115 = vld [vmem:[#allocation5 + $0x34] sm:$0xf]
    %v116 = vld [vmem:[#allocation5 + $0x38] sm:$0xf]
    %v117 = vld [vmem:[#allocation5 + $0x3c] sm:$0xf]
    %v118 = vld [vmem:[%s2] sm:$0x1]
    %v120 = vlaneseq
    %v121 = vshrl.u32 %v120, 7
    %v122 = vsub.s32 0, %v121
    %v123 = vrot.slane %v118, %v122
    %v141 = vunpack.c.l.b16 %v102
    %v142 = vunpack.c.l.b16 %v103
    %v143 = vunpack.c.l.b16 %v104
    %v144 = vunpack.c.l.b16 %v105
    %v145 = vunpack.c.l.b16 %v106
    %v146 = vunpack.c.l.b16 %v107
    %v147 = vunpack.c.l.b16 %v108
    %v148 = vunpack.c.l.b16 %v109
    %v149 = vunpack.c.l.b16 %v110
    %v150 = vunpack.c.l.b16 %v111
    %v151 = vunpack.c.l.b16 %v112
    %v152 = vunpack.c.l.b16 %v113
    %v153 = vunpack.c.l.b16 %v114
    %v154 = vunpack.c.l.b16 %v115
    %v155 = vunpack.c.l.b16 %v116
    %v156 = vunpack.c.l.b16 %v117
    %v157 = vpack.c.b16 %v142, %v141
    %v158 = vpack.c.b16 %v144, %v143
    %v159 = vpack.c.b16 %v146, %v145
    %v160 = vpack.c.b16 %v148, %v147
    %v161 = vpack.c.b16 %v150, %v149
    %v162 = vpack.c.b16 %v152, %v151
    %v163 = vpack.c.b16 %v154, %v153
    %v164 = vpack.c.b16 %v156, %v155
    %173 = vmatprep.subr.bf16.mxu0 0
    %174 = vmatpush1.bf16.msra.mxu0 %v157
    %175 = vmatprep.subr.bf16.mxu0 0
    %176 = vmatpush1.bf16.msra.mxu0 %v158
    %177 = vmatprep.subr.bf16.mxu0 0
    %178 = vmatpush1.bf16.msra.mxu0 %v159
    %179 = vmatprep.subr.bf16.mxu0 0
    %180 = vmatpush1.bf16.msra.mxu0 %v160
    %181 = vmatprep.subr.bf16.mxu0 0
    %182 = vmatpush1.bf16.msra.mxu0 %v161
    %183 = vmatprep.subr.bf16.mxu0 0
    %184 = vmatpush1.bf16.msra.mxu0 %v162
    %185 = vmatprep.subr.bf16.mxu0 0
    %186 = vmatpush1.bf16.msra.mxu0 %v163
    %187 = vmatprep.subr.bf16.mxu0 0
    %188 = vmatpush1.bf16.msra.mxu0 %v164
    %189 = vmatprep.subr.bf16.mxu0 0
    %190 = vmatpush1.bf16.msra.mxu0 0
    %191 = vmatprep.subr.bf16.mxu0 0
    %192 = vmatpush1.bf16.msra.mxu0 0
    %193 = vmatprep.subr.bf16.mxu0 0
    %194 = vmatpush1.bf16.msra.mxu0 0
    %195 = vmatprep.subr.bf16.mxu0 0
    %196 = vmatpush1.bf16.msra.mxu0 0
    %197 = vmatprep.subr.bf16.mxu0 0
    %198 = vmatpush1.bf16.msra.mxu0 0
    %199 = vmatprep.subr.bf16.mxu0 0
    %200 = vmatpush1.bf16.msra.mxu0 0
    %201 = vmatprep.subr.bf16.mxu0 0
    %202 = vmatpush1.bf16.msra.mxu0 0
    %203 = vmatprep.subr.bf16.mxu0 0
    %204 = vmatpush1.bf16.msra.mxu0 0
    %205 = vmatprep.mubr.bf16.mxu0 0
    %206 = vmatmul.mubr.bf16.gmra.mrb[0].mxu0 %v101
    %v207 = vpop.f32.mrb[0].mxu0
    %v208 = vadd.f32 %v123, %v207
    %v209 = vpop.f32.mrb[0].mxu0
    %v210 = vpop.f32.mrb[0].mxu0
    %v211 = vpop.f32.mrb[0].mxu0
    %212 = vdwg.mxu0
    %213 = vst [vmem:[#allocation11] sm:$0xff] %v208
    %v214 = vpack.c.bf16 %v208, %v208
    %v215 = vld [vmem:[#allocation7] sm:$0xf]
    %v216 = vld [vmem:[#allocation7 + $0x4] sm:$0xf]
    %v217 = vld [vmem:[#allocation7 + $0x8] sm:$0xf]
    %v218 = vld [vmem:[#allocation7 + $0xc] sm:$0xf]
    %v219 = vld [vmem:[#allocation7 + $0x10] sm:$0xf]
    %v220 = vld [vmem:[#allocation7 + $0x14] sm:$0xf]
    %v221 = vld [vmem:[#allocation7 + $0x18] sm:$0xf]
    %v222 = vld [vmem:[#allocation7 + $0x1c] sm:$0xf]
    %v223 = vld [vmem:[#allocation7 + $0x20] sm:$0xf]
    %v224 = vld [vmem:[#allocation7 + $0x24] sm:$0xf]
    %v225 = vld [vmem:[#allocation7 + $0x28] sm:$0xf]
    %v226 = vld [vmem:[#allocation7 + $0x2c] sm:$0xf]
    %v227 = vld [vmem:[#allocation7 + $0x30] sm:$0xf]
    %v228 = vld [vmem:[#allocation7 + $0x34] sm:$0xf]
    %v229 = vld [vmem:[#allocation7 + $0x38] sm:$0xf]
    %v230 = vld [vmem:[#allocation7 + $0x3c] sm:$0xf]
    %v231 = vld [vmem:[%s4] sm:$0x1]
    %v233 = vlaneseq
    %v234 = vshrl.u32 %v233, 7
    %v235 = vsub.s32 0, %v234
    %v236 = vrot.slane %v231, %v235
    %v254 = vunpack.c.l.b16 %v215
    %v255 = vunpack.c.l.b16 %v216
    %v256 = vunpack.c.l.b16 %v217
    %v257 = vunpack.c.l.b16 %v218
    %v258 = vunpack.c.l.b16 %v219
    %v259 = vunpack.c.l.b16 %v220
    %v260 = vunpack.c.l.b16 %v221
    %v261 = vunpack.c.l.b16 %v222
    %v262 = vunpack.c.l.b16 %v223
    %v263 = vunpack.c.l.b16 %v224
    %v264 = vunpack.c.l.b16 %v225
    %v265 = vunpack.c.l.b16 %v226
    %v266 = vunpack.c.l.b16 %v227
    %v267 = vunpack.c.l.b16 %v228
    %v268 = vunpack.c.l.b16 %v229
    %v269 = vunpack.c.l.b16 %v230
    %v270 = vpack.c.b16 %v255, %v254
    %v271 = vpack.c.b16 %v257, %v256
    %v272 = vpack.c.b16 %v259, %v258
    %v273 = vpack.c.b16 %v261, %v260
    %v274 = vpack.c.b16 %v263, %v262
    %v275 = vpack.c.b16 %v265, %v264
    %v276 = vpack.c.b16 %v267, %v266
    %v277 = vpack.c.b16 %v269, %v268
    %286 = vmatprep.subr.bf16.mxu0 0
    %287 = vmatpush1.bf16.msra.mxu0 %v270
    %288 = vmatprep.subr.bf16.mxu0 0
    %289 = vmatpush1.bf16.msra.mxu0 %v271
    %290 = vmatprep.subr.bf16.mxu0 0
    %291 = vmatpush1.bf16.msra.mxu0 %v272
    %292 = vmatprep.subr.bf16.mxu0 0
    %293 = vmatpush1.bf16.msra.mxu0 %v273
    %294 = vmatprep.subr.bf16.mxu0 0
    %295 = vmatpush1.bf16.msra.mxu0 %v274
    %296 = vmatprep.subr.bf16.mxu0 0
    %297 = vmatpush1.bf16.msra.mxu0 %v275
    %298 = vmatprep.subr.bf16.mxu0 0
    %299 = vmatpush1.bf16.msra.mxu0 %v276
    %300 = vmatprep.subr.bf16.mxu0 0
    %301 = vmatpush1.bf16.msra.mxu0 %v277
    %302 = vmatprep.subr.bf16.mxu0 0
    %303 = vmatpush1.bf16.msra.mxu0 0
    %304 = vmatprep.subr.bf16.mxu0 0
    %305 = vmatpush1.bf16.msra.mxu0 0
    %306 = vmatprep.subr.bf16.mxu0 0
    %307 = vmatpush1.bf16.msra.mxu0 0
    %308 = vmatprep.subr.bf16.mxu0 0
    %309 = vmatpush1.bf16.msra.mxu0 0
    %310 = vmatprep.subr.bf16.mxu0 0
    %311 = vmatpush1.bf16.msra.mxu0 0
    %312 = vmatprep.subr.bf16.mxu0 0
    %313 = vmatpush1.bf16.msra.mxu0 0
    %314 = vmatprep.subr.bf16.mxu0 0
    %315 = vmatpush1.bf16.msra.mxu0 0
    %316 = vmatprep.subr.bf16.mxu0 0
    %317 = vmatpush1.bf16.msra.mxu0 0
    %318 = vmatprep.mubr.bf16.mxu0 0
    %319 = vmatmul.mubr.bf16.gmra.mrb[0].mxu0 %v214
    %v320 = vpop.f32.mrb[0].mxu0
    %v321 = vadd.f32 %v236, %v320
    %v322 = vpop.f32.mrb[0].mxu0
    %v323 = vpop.f32.mrb[0].mxu0
    %v324 = vpop.f32.mrb[0].mxu0
    %325 = vdwg.mxu0
    %v326 = vmul.f32 %v321, %v321
    %v327 = vmul.f32 %v321, %v326
    %v328 = vmul.f32 %v327, 0.044715
    %v329 = vadd.f32 %v321, %v328
    %v330 = vmul.f32 %v329, 0.7978846
    %v331 = vtanh.pop %v330
    %v332 = vadd.f32 %v331, 1.0
    %v333 = vmul.f32 %v332, 0.5
    %v334 = vmul.f32 %v321, %v333
    %v335 = vpack.c.bf16 %v334, %v334
    %v336 = vld [vmem:[#allocation8] sm:$0xf]
    %v337 = vld [vmem:[#allocation8 + $0x4] sm:$0xf]
    %v338 = vld [vmem:[#allocation8 + $0x8] sm:$0xf]
    %v339 = vld [vmem:[#allocation8 + $0xc] sm:$0xf]
    %v340 = vld [vmem:[#allocation8 + $0x10] sm:$0xf]
    %v341 = vld [vmem:[#allocation8 + $0x14] sm:$0xf]
    %v342 = vld [vmem:[#allocation8 + $0x18] sm:$0xf]
    %v343 = vld [vmem:[#allocation8 + $0x1c] sm:$0xf]
    %v344 = vld [vmem:[#allocation8 + $0x20] sm:$0xf]
    %v345 = vld [vmem:[#allocation8 + $0x24] sm:$0xf]
    %v346 = vld [vmem:[#allocation8 + $0x28] sm:$0xf]
    %v347 = vld [vmem:[#allocation8 + $0x2c] sm:$0xf]
    %v348 = vld [vmem:[#allocation8 + $0x30] sm:$0xf]
    %v349 = vld [vmem:[#allocation8 + $0x34] sm:$0xf]
    %v350 = vld [vmem:[#allocation8 + $0x38] sm:$0xf]
    %v351 = vld [vmem:[#allocation8 + $0x3c] sm:$0xf]
    %v352 = vld [vmem:[%s6] sm:$0x1]
    %v354 = vlaneseq
    %v355 = vshrl.u32 %v354, 7
    %v356 = vsub.s32 0, %v355
    %v357 = vrot.slane %v352, %v356
    %v375 = vunpack.c.l.b16 %v336
    %v376 = vunpack.c.l.b16 %v337
    %v377 = vunpack.c.l.b16 %v338
    %v378 = vunpack.c.l.b16 %v339
    %v379 = vunpack.c.l.b16 %v340
    %v380 = vunpack.c.l.b16 %v341
    %v381 = vunpack.c.l.b16 %v342
    %v382 = vunpack.c.l.b16 %v343
    %v383 = vunpack.c.l.b16 %v344
    %v384 = vunpack.c.l.b16 %v345
    %v385 = vunpack.c.l.b16 %v346
    %v386 = vunpack.c.l.b16 %v347
    %v387 = vunpack.c.l.b16 %v348
    %v388 = vunpack.c.l.b16 %v349
    %v389 = vunpack.c.l.b16 %v350
    %v390 = vunpack.c.l.b16 %v351
    %v391 = vpack.c.b16 %v376, %v375
    %v392 = vpack.c.b16 %v378, %v377
    %v393 = vpack.c.b16 %v380, %v379
    %v394 = vpack.c.b16 %v382, %v381
    %v395 = vpack.c.b16 %v384, %v383
    %v396 = vpack.c.b16 %v386, %v385
    %v397 = vpack.c.b16 %v388, %v387
    %v398 = vpack.c.b16 %v390, %v389
    %407 = vmatprep.subr.bf16.mxu0 0
    %408 = vmatpush1.bf16.msra.mxu0 %v391
    %409 = vmatprep.subr.bf16.mxu0 0
    %410 = vmatpush1.bf16.msra.mxu0 %v392
    %411 = vmatprep.subr.bf16.mxu0 0
    %412 = vmatpush1.bf16.msra.mxu0 %v393
    %413 = vmatprep.subr.bf16.mxu0 0
    %414 = vmatpush1.bf16.msra.mxu0 %v394
    %415 = vmatprep.subr.bf16.mxu0 0
    %416 = vmatpush1.bf16.msra.mxu0 %v395
    %417 = vmatprep.subr.bf16.mxu0 0
    %418 = vmatpush1.bf16.msra.mxu0 %v396
    %419 = vmatprep.subr.bf16.mxu0 0
    %420 = vmatpush1.bf16.msra.mxu0 %v397
    %421 = vmatprep.subr.bf16.mxu0 0
    %422 = vmatpush1.bf16.msra.mxu0 %v398
    %423 = vmatprep.subr.bf16.mxu0 0
    %424 = vmatpush1.bf16.msra.mxu0 0
    %425 = vmatprep.subr.bf16.mxu0 0
    %426 = vmatpush1.bf16.msra.mxu0 0
    %427 = vmatprep.subr.bf16.mxu0 0
    %428 = vmatpush1.bf16.msra.mxu0 0
    %429 = vmatprep.subr.bf16.mxu0 0
    %430 = vmatpush1.bf16.msra.mxu0 0
    %431 = vmatprep.subr.bf16.mxu0 0
    %432 = vmatpush1.bf16.msra.mxu0 0
    %433 = vmatprep.subr.bf16.mxu0 0
    %434 = vmatpush1.bf16.msra.mxu0 0
    %435 = vmatprep.subr.bf16.mxu0 0
    %436 = vmatpush1.bf16.msra.mxu0 0
    %437 = vmatprep.subr.bf16.mxu0 0
    %438 = vmatpush1.bf16.msra.mxu0 0
    %439 = vmatprep.mubr.bf16.mxu0 0
    %440 = vmatmul.mubr.bf16.gmra.mrb[0].mxu0 %v335
    %v441 = vpop.f32.mrb[0].mxu0
    %v442 = vadd.f32 %v357, %v441
    %v443 = vpop.f32.mrb[0].mxu0
    %v444 = vpop.f32.mrb[0].mxu0
    %v445 = vpop.f32.mrb[0].mxu0
    %446 = vdwg.mxu0
    %447 = vst [vmem:[#allocation12] sm:$0xff] %v442
    %v448 = vmul.f32 %v442, %v442
    %449 = vadd.xlane.f32.xlu0 %v448
    %v450 = vpop.xlane.xlu0 %449
    %v451 = vmax.f32 %v450, 1e-24
    %v452 = vrsqrt.pop %v451
    %v453 = vmul.f32 %v442, %v452
    %v454 = vpack.c.bf16 %v453, %v453
    %v455 = vld [vmem:[#allocation10] sm:$0xf]
    %v456 = vld [vmem:[#allocation10 + $0x4] sm:$0xf]
    %v457 = vld [vmem:[#allocation10 + $0x8] sm:$0xf]
    %v458 = vld [vmem:[#allocation10 + $0xc] sm:$0xf]
    %v459 = vld [vmem:[#allocation10 + $0x10] sm:$0xf]
    %v460 = vld [vmem:[#allocation10 + $0x14] sm:$0xf]
    %v461 = vld [vmem:[#allocation10 + $0x18] sm:$0xf]
    %v462 = vld [vmem:[#allocation10 + $0x1c] sm:$0xf]
    %v463 = vld [vmem:[#allocation10 + $0x20] sm:$0xf]
    %v464 = vld [vmem:[#allocation10 + $0x24] sm:$0xf]
    %v465 = vld [vmem:[#allocation10 + $0x28] sm:$0xf]
    %v466 = vld [vmem:[#allocation10 + $0x2c] sm:$0xf]
    %v467 = vld [vmem:[#allocation10 + $0x30] sm:$0xf]
    %v468 = vld [vmem:[#allocation10 + $0x34] sm:$0xf]
    %v469 = vld [vmem:[#allocation10 + $0x38] sm:$0xf]
    %v470 = vld [vmem:[#allocation10 + $0x3c] sm:$0xf]
    %v487 = vunpack.c.l.b16 %v455
    %v488 = vunpack.c.l.b16 %v456
    %v489 = vunpack.c.l.b16 %v457
    %v490 = vunpack.c.l.b16 %v458
    %v491 = vunpack.c.l.b16 %v459
    %v492 = vunpack.c.l.b16 %v460
    %v493 = vunpack.c.l.b16 %v461
    %v494 = vunpack.c.l.b16 %v462
    %v495 = vunpack.c.l.b16 %v463
    %v496 = vunpack.c.l.b16 %v464
    %v497 = vunpack.c.l.b16 %v465
    %v498 = vunpack.c.l.b16 %v466
    %v499 = vunpack.c.l.b16 %v467
    %v500 = vunpack.c.l.b16 %v468
    %v501 = vunpack.c.l.b16 %v469
    %v502 = vunpack.c.l.b16 %v470
    %v503 = vpack.c.b16 %v488, %v487
    %v504 = vpack.c.b16 %v490, %v489
    %v505 = vpack.c.b16 %v492, %v491
    %v506 = vpack.c.b16 %v494, %v493
    %v507 = vpack.c.b16 %v496, %v495
    %v508 = vpack.c.b16 %v498, %v497
    %v509 = vpack.c.b16 %v500, %v499
    %v510 = vpack.c.b16 %v502, %v501
    %519 = vmatprep.subr.bf16.mxu0 0
    %520 = vmatpush1.bf16.msra.mxu0 %v503
    %521 = vmatprep.subr.bf16.mxu0 0
    %522 = vmatpush1.bf16.msra.mxu0 %v504
    %523 = vmatprep.subr.bf16.mxu0 0
    %524 = vmatpush1.bf16.msra.mxu0 %v505
    %525 = vmatprep.subr.bf16.mxu0 0
    %526 = vmatpush1.bf16.msra.mxu0 %v506
    %527 = vmatprep.subr.bf16.mxu0 0
    %528 = vmatpush1.bf16.msra.mxu0 %v507
    %529 = vmatprep.subr.bf16.mxu0 0
    %530 = vmatpush1.bf16.msra.mxu0 %v508
    %531 = vmatprep.subr.bf16.mxu0 0
    %532 = vmatpush1.bf16.msra.mxu0 %v509
    %533 = vmatprep.subr.bf16.mxu0 0
    %534 = vmatpush1.bf16.msra.mxu0 %v510
    %535 = vmatprep.subr.bf16.mxu0 0
    %536 = vmatpush1.bf16.msra.mxu0 0
    %537 = vmatprep.subr.bf16.mxu0 0
    %538 = vmatpush1.bf16.msra.mxu0 0
    %539 = vmatprep.subr.bf16.mxu0 0
    %540 = vmatpush1.bf16.msra.mxu0 0
    %541 = vmatprep.subr.bf16.mxu0 0
    %542 = vmatpush1.bf16.msra.mxu0 0
    %543 = vmatprep.subr.bf16.mxu0 0
    %544 = vmatpush1.bf16.msra.mxu0 0
    %545 = vmatprep.subr.bf16.mxu0 0
    %546 = vmatpush1.bf16.msra.mxu0 0
    %547 = vmatprep.subr.bf16.mxu0 0
    %548 = vmatpush1.bf16.msra.mxu0 0
    %549 = vmatprep.subr.bf16.mxu0 0
    %550 = vmatpush1.bf16.msra.mxu0 0
    %551 = vmatprep.mubr.bf16.mxu0 0
    %552 = vmatmul.mubr.bf16.gmra.mrb[0].mxu0 %v454
    %v553 = vpop.f32.mrb[0].mxu0
    %v554 = vadd.f32 0.0, %v553
    %v555 = vpop.f32.mrb[0].mxu0
    %v556 = vpop.f32.mrb[0].mxu0
    %v557 = vpop.f32.mrb[0].mxu0
    %558 = vdwg.mxu0
    %559 = vst [vmem:[#allocation14] sm:$0xff] %v554
    // Predicated region
    $region54: #{tpu_custom_call.1} parent=1 // pred_check
      _
    $region55: #{tpu_custom_call.1} parent=1 // pred_check_branch
      %561 = sbr.rel (0) target = $region57
    $region56: #{tpu_custom_call.1} parent=1 // pred_region
      %s563 = ssub.s32 128, 128
      %564 = vsyncadd [#allocation4], %s563
      %s566 = sshll.u32 [#allocation11], 4
      %s567 = int_to_ptr.vmem [resolvable:$true] %s566
      %569 = dma.vmem_to_hbm [thread:$0]  %s567, 128, %s8, [#allocation4]
    $region57: #{tpu_custom_call.1} parent=1 // pred_fallthru
      _
    // Predicated region
    $region58: #{tpu_custom_call.1} parent=1 // pred_check
      _
    $region59: #{tpu_custom_call.1} parent=1 // pred_check_branch
      %571 = sbr.rel (0) target = $region61
    $region60: #{tpu_custom_call.1} parent=1 // pred_region
      %s573 = ssub.s32 128, 128
      %574 = vsyncadd [#allocation13], %s573
      %s576 = sshll.u32 [#allocation12], 4
      %s577 = int_to_ptr.vmem [resolvable:$true] %s576
      %579 = dma.vmem_to_hbm [thread:$0]  %s577, 128, %s9, [#allocation13]
    $region61: #{tpu_custom_call.1} parent=1 // pred_fallthru
      _
    // Predicated region
    $region62: #{tpu_custom_call.1} parent=1 // pred_check
      _
    $region63: #{tpu_custom_call.1} parent=1 // pred_check_branch
      %581 = sbr.rel (0) target = $region65
    $region64: #{tpu_custom_call.1} parent=1 // pred_region
      %s583 = ssub.s32 128, 128
      %584 = vsyncadd [#allocation13], %s583
      %s586 = sshll.u32 [#allocation14], 4
      %s587 = int_to_ptr.vmem [resolvable:$true] %s586
      %589 = dma.vmem_to_hbm [thread:$0]  %s587, 128, %s10, [#allocation13]
    $region65: #{tpu_custom_call.1} parent=1 // pred_fallthru
      _
    // Predicated region
    $region66: #{tpu_custom_call.1} parent=1 // pred_check
      _
    $region67: #{tpu_custom_call.1} parent=1 // pred_check_branch
      %591 = sbr.rel (0) target = $region69
    $region68: #{tpu_custom_call.1} parent=1 // pred_region
      %592 = dma.done [#allocation4], 128
    $region69: #{tpu_custom_call.1} parent=1 // pred_fallthru
      _
    // Predicated region
    $region70: #{tpu_custom_call.1} parent=1 // pred_check
      _
    $region71: #{tpu_custom_call.1} parent=1 // pred_check_branch
      %594 = sbr.rel (0) target = $region73
    $region72: #{tpu_custom_call.1} parent=1 // pred_region
      %595 = dma.done [#allocation13], 128
    $region73: #{tpu_custom_call.1} parent=1 // pred_fallthru
      _
    // Predicated region
    $region74: #{tpu_custom_call.1} parent=1 // pred_check
      _
    $region75: #{tpu_custom_call.1} parent=1 // pred_check_branch
      %597 = sbr.rel (0) target = $region77
    $region76: #{tpu_custom_call.1} parent=1 // pred_region
      %598 = dma.done [#allocation13], 128
    $region77: #{tpu_custom_call.1} parent=1 // pred_fallthru
      _
    %599 = vsyncpa [#allocation3], 1
    %600 = vsyncpa [#allocation6], 1
    %601 = vsyncpa [#allocation9], 1
    %602 = vsyncpa [#allocation4], 1
    %603 = vsyncpa [#allocation13], 1

</llo_original>
